<compile_context>
chip_gen: v5e
topology: v5e:2x2
jax: 0.10.0
libtpu: 0.0.40
codegen_flags: <defaults>
</compile_context>

<pallas_src>
import functools

import jax
import jax.numpy as jnp
from jax import lax
from jax.experimental import pallas as pl
from jax.experimental.pallas import tpu as pltpu

LN_EPS = 1e-5  # torch.nn.LayerNorm default


def _layernorm(x, gamma, beta):
    mean = jnp.mean(x, axis=-1, keepdims=True)
    var = jnp.mean((x - mean) ** 2, axis=-1, keepdims=True)
    return (x - mean) * lax.rsqrt(var + LN_EPS) * gamma + beta


def _gelu_exact(x):
    # torch.nn.GELU() default = exact erf formulation.
    # TODO(synk): jax.nn.gelu(approximate=True) moves this to the EUP slot if
    #             exact-erf parity with torch is not required.
    return 0.5 * x * (1.0 + lax.erf(x * (2.0 ** -0.5)))


# -----------------------------------------------------------------------------
# Fused kernel: one grid step == one transformer layer over the whole batch.
# The residual stream is carried in o_ref (resident across the layer axis).
# -----------------------------------------------------------------------------
def transformer_layer_kernel(x_ref, vecs_ref, b1_ref, wqkv_ref, wout_ref,
                             w1_ref, w2_ref, o_ref, *, heads, dim_head):
    l = pl.program_id(0)
    B, N, D = x_ref.shape
    inner = heads * dim_head
    mxu_dt = wqkv_ref.dtype           # MXU input dtype (f32 or bf16)
    scale = dim_head ** (-0.5)

    # Load the fresh input once; afterwards o_ref carries x across layers.
    @pl.when(l == 0)
    def _():
        o_ref[...] = x_ref[...].astype(o_ref.dtype)

    x = o_ref[...].astype(jnp.float32)          # (B, N, D), f32 residual stream

    vecs = vecs_ref[0]                           # (6, D) packed small vectors
    ln1_g, ln1_b = vecs[0:1, :], vecs[1:2, :]
    b_out = vecs[2:3, :]
    ln2_g, ln2_b = vecs[3:4, :], vecs[4:5, :]
    b2 = vecs[5:6, :]

    # ---------------- Attention sub-block:  x = x + to_out(attn(LN(x))) -----
    xn = _layernorm(x, ln1_g, ln1_b)                         # (B, N, D) f32
    xn2 = xn.reshape(B * N, D)                               # leading-dim merge
    # ONE fused QKV projection (3*heads*dim_head-wide MXU output).
    qkv = jnp.dot(xn2.astype(mxu_dt), wqkv_ref[0],
                  preferred_element_type=jnp.float32)        # (B*N, 3*inner)
    qkv = qkv.reshape(B, N, 3 * inner)

    head_outs = []
    for h in range(heads):                                   # static, small
        q_h = qkv[:, :, h * dim_head:(h + 1) * dim_head] * scale
        k_h = qkv[:, :, inner + h * dim_head: inner + (h + 1) * dim_head]
        v_h = qkv[:, :, 2 * inner + h * dim_head: 2 * inner + (h + 1) * dim_head]
        dots = jnp.einsum('bnd,bmd->bnm', q_h.astype(mxu_dt), k_h.astype(mxu_dt),
                          preferred_element_type=jnp.float32)        # (B, N, N)
        dots = dots - jnp.max(dots, axis=-1, keepdims=True)
        e = jnp.exp(dots)
        attn = e / jnp.sum(e, axis=-1, keepdims=True)                # exact divide
        head_outs.append(
            jnp.einsum('bnm,bmd->bnd', attn.astype(mxu_dt), v_h.astype(mxu_dt),
                       preferred_element_type=jnp.float32))          # (B, N, dh)

    # head -> lane repack (XLU), then ONE out-projection matmul (K = inner).
    attn_cat = jnp.concatenate(head_outs, axis=-1).reshape(B * N, inner)
    attn_out = jnp.dot(attn_cat.astype(mxu_dt), wout_ref[0],
                       preferred_element_type=jnp.float32) + b_out   # (B*N, D)
    x = x + attn_out.reshape(B, N, D)

    # ---------------- FeedForward sub-block:  x = x + W2(GELU(W1(LN(x)))) ---
    xn = _layernorm(x, ln2_g, ln2_b)
    xn2 = xn.reshape(B * N, D)
    hdn = jnp.dot(xn2.astype(mxu_dt), w1_ref[0],
                  preferred_element_type=jnp.float32) + b1_ref[0]    # (B*N, H)
    hdn = _gelu_exact(hdn)
    y = jnp.dot(hdn.astype(mxu_dt), w2_ref[0],
                preferred_element_type=jnp.float32) + b2             # (B*N, D)
    x = x + y.reshape(B, N, D)

    o_ref[...] = x.astype(o_ref.dtype)           # carry (HBM writeback once at end)


# -----------------------------------------------------------------------------
# Wrapper: single pallas_call over grid (depth,)
# -----------------------------------------------------------------------------
def transformer_forward(x, params, heads, dim_head):
    B, N, D = x.shape
    depth, _, H = params["w1"].shape
    inner = heads * dim_head

    kernel = functools.partial(transformer_layer_kernel,
                               heads=heads, dim_head=dim_head)

    # Real per-step VMEM footprint: x block + out carry + 2x double-buffered
    # per-layer weights + small vectors, plus headroom.
    w_item = jnp.dtype(params["w_qkv"].dtype).itemsize
    per_layer_w = (D * 3 * inner + inner * D + D * H + H * D) * w_item \
        + (6 * D + H) * 4
    vmem_limit = int(2 * B * N * D * 4 + 2 * per_layer_w + (4 << 20))
    vmem_limit = max(8 << 20, min(vmem_limit, 100 << 20))

    return pl.pallas_call(
        kernel,
        out_shape=jax.ShapeDtypeStruct((B, N, D), x.dtype),
        grid=(depth,),
        in_specs=[
            # x: full batch block, resident across the layer axis (loaded once)
            pl.BlockSpec((B, N, D), lambda l: (0, 0, 0)),
            # packed (ln1_g, ln1_b, b_out, ln2_g, ln2_b, b2)
            pl.BlockSpec((1, 6, D), lambda l: (l, 0, 0)),
            # ff hidden bias
            pl.BlockSpec((1, 1, H), lambda l: (l, 0, 0)),
            # fused qkv projection weights: (depth, D, 3*inner)
            pl.BlockSpec((1, D, 3 * inner), lambda l: (l, 0, 0)),
            # fused output-projection weights: (depth, inner, D)
            pl.BlockSpec((1, inner, D), lambda l: (l, 0, 0)),
            # ff weights
            pl.BlockSpec((1, D, H), lambda l: (l, 0, 0)),
            pl.BlockSpec((1, H, D), lambda l: (l, 0, 0)),
        ],
        # output block index ignores l -> resident carry, written to HBM once
        out_specs=pl.BlockSpec((B, N, D), lambda l: (0, 0, 0)),
        compiler_params=pltpu.CompilerParams(
            dimension_semantics=("arbitrary",),
            vmem_limit_bytes=vmem_limit),
    )(x, params["vecs"], params["b1"], params["w_qkv"], params["w_out"],
      params["w1"], params["w2"])


# -----------------------------------------------------------------------------
# Deterministic parameter init (shapes follow the PyTorch module __init__),
# stored in the stacked / fused layout consumed by the kernel.
# param_dtype=jnp.bfloat16 gives the bf16 MXU-input path on v6e/v7x.
# -----------------------------------------------------------------------------
def init_params(key, dim, depth, heads, dim_head, mlp_dim,
                param_dtype=jnp.float32):
    inner = heads * dim_head
    keys = jax.random.split(key, 6)

    def nrm(k, shape):
        return 0.02 * jax.random.normal(k, shape, jnp.float32)

    # to_qkv (bias=False): columns [0:inner]=q, [inner:2*inner]=k, [2*inner:]=v
    w_qkv = nrm(keys[0], (depth, dim, 3 * inner)).astype(param_dtype)
    # to_out Linear: (inner, dim)
    w_out = nrm(keys[1], (depth, inner, dim)).astype(param_dtype)
    # FeedForward
    w1 = nrm(keys[2], (depth, dim, mlp_dim)).astype(param_dtype)
    b1 = nrm(keys[3], (depth, 1, mlp_dim))                    # f32 (added post-accum)
    w2 = nrm(keys[4], (depth, mlp_dim, dim)).astype(param_dtype)
    b_out = nrm(keys[5], (depth, dim))
    # packed small vectors: (ln1_g, ln1_b, b_out, ln2_g, ln2_b, b2)
    vecs = jnp.stack(
        [
            jnp.ones((depth, dim), jnp.float32),    # attn LayerNorm gamma
            jnp.zeros((depth, dim), jnp.float32),   # attn LayerNorm beta
            b_out,                                  # to_out bias
            jnp.ones((depth, dim), jnp.float32),    # ff LayerNorm gamma
            jnp.zeros((depth, dim), jnp.float32),   # ff LayerNorm beta
            jnp.zeros((depth, dim), jnp.float32),   # ff second Linear bias
        ],
        axis=1,
    )                                               # (depth, 6, dim) f32

    return {"vecs": vecs, "b1": b1, "w_qkv": w_qkv, "w_out": w_out,
            "w1": w1, "w2": w2}


# -----------------------------------------------------------------------------
# Pure-JAX reference (mirrors the torch module) for a self-check.
# -----------------------------------------------------------------------------
def transformer_ref(x, params, heads, dim_head):
    B, N, D = x.shape
    depth = params["w1"].shape[0]
    inner = heads * dim_head
    x = x.astype(jnp.float32)
    for l in range(depth):
        vecs = params["vecs"][l]
        ln1_g, ln1_b, b_out, ln2_g, ln2_b, b2 = (vecs[i] for i in range(6))
        xn = _layernorm(x, ln1_g, ln1_b)
        qkv = xn @ params["w_qkv"][l].astype(jnp.float32)
        q, k, v = jnp.split(qkv, 3, axis=-1)
        sh = lambda t: t.reshape(B, N, heads, dim_head).transpose(0, 2, 1, 3)
        q, k, v = sh(q), sh(k), sh(v)
        dots = jnp.einsum('bhnd,bhmd->bhnm', q, k) * dim_head ** (-0.5)
        attn = jax.nn.softmax(dots, axis=-1)
        out = jnp.einsum('bhnm,bhmd->bhnd', attn, v)
        out = out.transpose(0, 2, 1, 3).reshape(B, N, inner)
        x = x + out @ params["w_out"][l].astype(jnp.float32) + b_out
        xn = _layernorm(x, ln2_g, ln2_b)
        hdn = _gelu_exact(xn @ params["w1"][l].astype(jnp.float32) + params["b1"][l])
        x = x + hdn @ params["w2"][l].astype(jnp.float32) + b2
    return x


if __name__ == "__main__":
    # small config consistent with the module's forward
    B, N = 2, 8            # batch, sequence
    dim = 32               # embedding dim
    depth = 2
    heads = 2
    dim_head = 16
    mlp_dim = 64

    key = jax.random.PRNGKey(0)
    kx, kp = jax.random.split(key)
    x = jax.random.normal(kx, (B, N, dim), jnp.float32)
    # f32 weights at toy shapes for exact torch-f32 parity; pass
    # param_dtype=jnp.bfloat16 for the production MXU-input path on v6e/v7x.
    params = init_params(kp, dim, depth, heads, dim_head, mlp_dim,
                         param_dtype=jnp.float32)

    out = jax.block_until_ready(transformer_forward(x, params, heads, dim_head))
    assert out.shape == (B, N, dim)

    ref = transformer_ref(x, params, heads, dim_head)
    assert jnp.allclose(out, ref, atol=2e-3, rtol=2e-3), \
        float(jnp.max(jnp.abs(out - ref)))
    print("KERNEL_OK")
</pallas_src>

<mosaic_0001>
module attributes {stable_mosaic.version = 11 : i64} {
  func.func @transformer_layer_kernel(%arg0: i32, %arg1: memref<2x8x32xf32, #tpu.memory_space<vmem>>, %arg2: memref<1x6x32xf32, #tpu.memory_space<vmem>>, %arg3: memref<1x1x64xf32, #tpu.memory_space<vmem>>, %arg4: memref<1x32x96xf32, #tpu.memory_space<vmem>>, %arg5: memref<1x32x32xf32, #tpu.memory_space<vmem>>, %arg6: memref<1x32x64xf32, #tpu.memory_space<vmem>>, %arg7: memref<1x64x32xf32, #tpu.memory_space<vmem>>, %arg8: memref<2x8x32xf32, #tpu.memory_space<vmem>>) attributes {dimension_semantics = [#tpu.dimension_semantics<arbitrary>], iteration_bounds = array<i64: 2>, scalar_prefetch = 0 : i64, scratch_operands = 0 : i64, tpu.core_type = #tpu.core_type<tc>, window_params = [{pipeline_mode = #tpu.pipeline_mode<synchronous>, transform_indices = @transform_0, window_bounds = array<i64: 2, 8, 32>}, {transform_indices = @transform_1, window_bounds = array<i64: 1, 6, 32>}, {transform_indices = @transform_2, window_bounds = array<i64: 1, 1, 64>}, {transform_indices = @transform_3, window_bounds = array<i64: 1, 32, 96>}, {transform_indices = @transform_4, window_bounds = array<i64: 1, 32, 32>}, {transform_indices = @transform_5, window_bounds = array<i64: 1, 32, 64>}, {transform_indices = @transform_6, window_bounds = array<i64: 1, 64, 32>}, {pipeline_mode = #tpu.pipeline_mode<synchronous>, transform_indices = @transform_7, window_bounds = array<i64: 2, 8, 32>}]} {
    %c0_i32 = arith.constant 0 : i32
    %0 = arith.cmpi eq, %arg0, %c0_i32 : i32
    %1 = arith.extui %0 : i1 to i32
    %c0_i32_0 = arith.constant 0 : i32
    %2 = arith.cmpi ne, %1, %c0_i32_0 : i32
    scf.if %2 {
      %c0_50 = arith.constant 0 : index
      %c0_51 = arith.constant 0 : index
      %c0_52 = arith.constant 0 : index
      %130 = vector.load %arg1[%c0_50, %c0_51, %c0_52] : memref<2x8x32xf32, #tpu.memory_space<vmem>>, vector<2x8x32xf32>
      %c0_53 = arith.constant 0 : index
      %c0_54 = arith.constant 0 : index
      %c0_55 = arith.constant 0 : index
      %131 = vector.load %arg8[%c0_53, %c0_54, %c0_55] : memref<2x8x32xf32, #tpu.memory_space<vmem>>, vector<2x8x32xf32>
      tpu.vector_store %arg8[%c0_53, %c0_54, %c0_55], %130 {strides = array<i32>} : memref<2x8x32xf32, #tpu.memory_space<vmem>>, vector<2x8x32xf32>,
    } else {
    }
    %c0 = arith.constant 0 : index
    %c0_1 = arith.constant 0 : index
    %c0_2 = arith.constant 0 : index
    %3 = vector.load %arg8[%c0, %c0_1, %c0_2] : memref<2x8x32xf32, #tpu.memory_space<vmem>>, vector<2x8x32xf32>
    %c0_3 = arith.constant 0 : index
    %c0_4 = arith.constant 0 : index
    %c0_5 = arith.constant 0 : index
    %4 = vector.load %arg2[%c0_3, %c0_4, %c0_5] : memref<1x6x32xf32, #tpu.memory_space<vmem>>, vector<1x6x32xf32>
    %5 = vector.shape_cast %4 : vector<1x6x32xf32> to vector<6x32xf32>
    %6 = vector.extract_strided_slice %5 {offsets = [0, 0], sizes = [1, 32], strides = [1, 1]} : vector<6x32xf32> to vector<1x32xf32>
    %7 = vector.extract_strided_slice %5 {offsets = [1, 0], sizes = [1, 32], strides = [1, 1]} : vector<6x32xf32> to vector<1x32xf32>
    %8 = vector.extract_strided_slice %5 {offsets = [2, 0], sizes = [1, 32], strides = [1, 1]} : vector<6x32xf32> to vector<1x32xf32>
    %9 = vector.extract_strided_slice %5 {offsets = [3, 0], sizes = [1, 32], strides = [1, 1]} : vector<6x32xf32> to vector<1x32xf32>
    %10 = vector.extract_strided_slice %5 {offsets = [4, 0], sizes = [1, 32], strides = [1, 1]} : vector<6x32xf32> to vector<1x32xf32>
    %11 = vector.extract_strided_slice %5 {offsets = [5, 0], sizes = [1, 32], strides = [1, 1]} : vector<6x32xf32> to vector<1x32xf32>
    %cst = arith.constant dense<0.000000e+00> : vector<2x8xf32>
    %12 = vector.multi_reduction <add>, %3, %cst [2] : vector<2x8x32xf32> to vector<2x8xf32>
    %13 = vector.shape_cast %12 : vector<2x8xf32> to vector<2x8x1xf32>
    %cst_6 = arith.constant 3.200000e+01 : f32
    %14 = vector.broadcast %cst_6 : f32 to vector<2x8x1xf32>
    %15 = arith.divf %13, %14 : vector<2x8x1xf32>
    %16 = vector.broadcast %15 : vector<2x8x1xf32> to vector<2x8x32xf32>
    %17 = arith.subf %3, %16 : vector<2x8x32xf32>
    %18 = arith.mulf %17, %17 : vector<2x8x32xf32>
    %cst_7 = arith.constant dense<0.000000e+00> : vector<2x8xf32>
    %19 = vector.multi_reduction <add>, %18, %cst_7 [2] : vector<2x8x32xf32> to vector<2x8xf32>
    %20 = vector.shape_cast %19 : vector<2x8xf32> to vector<2x8x1xf32>
    %cst_8 = arith.constant 3.200000e+01 : f32
    %21 = vector.broadcast %cst_8 : f32 to vector<2x8x1xf32>
    %22 = arith.divf %20, %21 : vector<2x8x1xf32>
    %23 = vector.broadcast %15 : vector<2x8x1xf32> to vector<2x8x32xf32>
    %24 = arith.subf %3, %23 : vector<2x8x32xf32>
    %cst_9 = arith.constant 9.99999974E-6 : f32
    %25 = vector.broadcast %cst_9 : f32 to vector<2x8x1xf32>
    %26 = arith.addf %22, %25 : vector<2x8x1xf32>
    %27 = math.rsqrt %26 : vector<2x8x1xf32>
    %28 = vector.broadcast %27 : vector<2x8x1xf32> to vector<2x8x32xf32>
    %29 = arith.mulf %24, %28 : vector<2x8x32xf32>
    %30 = vector.shape_cast %6 : vector<1x32xf32> to vector<1x1x32xf32>
    %31 = vector.broadcast %30 : vector<1x1x32xf32> to vector<2x8x32xf32>
    %32 = arith.mulf %29, %31 : vector<2x8x32xf32>
    %33 = vector.shape_cast %7 : vector<1x32xf32> to vector<1x1x32xf32>
    %34 = vector.broadcast %33 : vector<1x1x32xf32> to vector<2x8x32xf32>
    %35 = arith.addf %32, %34 : vector<2x8x32xf32>
    %36 = vector.shape_cast %35 : vector<2x8x32xf32> to vector<16x32xf32>
    %c0_10 = arith.constant 0 : index
    %c0_11 = arith.constant 0 : index
    %c0_12 = arith.constant 0 : index
    %37 = vector.load %arg4[%c0_10, %c0_11, %c0_12] : memref<1x32x96xf32, #tpu.memory_space<vmem>>, vector<1x32x96xf32>
    %38 = vector.shape_cast %37 : vector<1x32x96xf32> to vector<32x96xf32>
    %cst_13 = arith.constant dense<0.000000e+00> : vector<16x96xf32>
    %39 = tpu.matmul %36, %38, %cst_13 {dimension_numbers = #tpu.dot_dimension_numbers<[1], [0], [0], [1], [0, 0, 1, 1], [], []>} : vector<16x32xf32>, vector<32x96xf32>, vector<16x96xf32> -> vector<16x96xf32>
    %40 = vector.shape_cast %39 : vector<16x96xf32> to vector<2x8x96xf32>
    %41 = vector.extract_strided_slice %40 {offsets = [0, 0, 0], sizes = [2, 8, 16], strides = [1, 1, 1]} : vector<2x8x96xf32> to vector<2x8x16xf32>
    %cst_14 = arith.constant 2.500000e-01 : f32
    %42 = vector.broadcast %cst_14 : f32 to vector<2x8x16xf32>
    %43 = arith.mulf %41, %42 : vector<2x8x16xf32>
    %44 = vector.extract_strided_slice %40 {offsets = [0, 0, 32], sizes = [2, 8, 16], strides = [1, 1, 1]} : vector<2x8x96xf32> to vector<2x8x16xf32>
    %45 = vector.extract_strided_slice %40 {offsets = [0, 0, 64], sizes = [2, 8, 16], strides = [1, 1, 1]} : vector<2x8x96xf32> to vector<2x8x16xf32>
    "tpu.trace_start"() <{level = 10 : i32, message = "bnd,bmd->bnm"}> : () -> ()
    %cst_15 = arith.constant dense<0.000000e+00> : vector<2x8x8xf32>
    %46 = tpu.matmul %43, %44, %cst_15 {dimension_numbers = #tpu.dot_dimension_numbers<[2], [2], [1], [1], [0, 0, 0, 1, 1, 1], [0], [0]>} : vector<2x8x16xf32>, vector<2x8x16xf32>, vector<2x8x8xf32> -> vector<2x8x8xf32>
    "tpu.trace_stop"() : () -> ()
    %cst_16 = arith.constant dense<0xFF800000> : vector<2x8xf32>
    %47 = vector.multi_reduction <maximumf>, %46, %cst_16 [2] : vector<2x8x8xf32> to vector<2x8xf32>
    %48 = vector.shape_cast %47 : vector<2x8xf32> to vector<2x8x1xf32>
    %49 = vector.broadcast %48 : vector<2x8x1xf32> to vector<2x8x8xf32>
    %50 = arith.subf %46, %49 : vector<2x8x8xf32>
    %51 = math.exp %50 : vector<2x8x8xf32>
    %cst_17 = arith.constant dense<0.000000e+00> : vector<2x8xf32>
    %52 = vector.multi_reduction <add>, %51, %cst_17 [2] : vector<2x8x8xf32> to vector<2x8xf32>
    %53 = vector.shape_cast %52 : vector<2x8xf32> to vector<2x8x1xf32>
    %54 = vector.broadcast %53 : vector<2x8x1xf32> to vector<2x8x8xf32>
    %55 = arith.divf %51, %54 : vector<2x8x8xf32>
    "tpu.trace_start"() <{level = 10 : i32, message = "bnm,bmd->bnd"}> : () -> ()
    %cst_18 = arith.constant dense<0.000000e+00> : vector<2x8x16xf32>
    %56 = tpu.matmul %55, %45, %cst_18 {dimension_numbers = #tpu.dot_dimension_numbers<[2], [1], [1], [2], [0, 0, 0, 1, 1, 2], [0], [0]>} : vector<2x8x8xf32>, vector<2x8x16xf32>, vector<2x8x16xf32> -> vector<2x8x16xf32>
    "tpu.trace_stop"() : () -> ()
    %57 = vector.extract_strided_slice %40 {offsets = [0, 0, 16], sizes = [2, 8, 16], strides = [1, 1, 1]} : vector<2x8x96xf32> to vector<2x8x16xf32>
    %cst_19 = arith.constant 2.500000e-01 : f32
    %58 = vector.broadcast %cst_19 : f32 to vector<2x8x16xf32>
    %59 = arith.mulf %57, %58 : vector<2x8x16xf32>
    %60 = vector.extract_strided_slice %40 {offsets = [0, 0, 48], sizes = [2, 8, 16], strides = [1, 1, 1]} : vector<2x8x96xf32> to vector<2x8x16xf32>
    %61 = vector.extract_strided_slice %40 {offsets = [0, 0, 80], sizes = [2, 8, 16], strides = [1, 1, 1]} : vector<2x8x96xf32> to vector<2x8x16xf32>
    "tpu.trace_start"() <{level = 10 : i32, message = "bnd,bmd->bnm"}> : () -> ()
    %cst_20 = arith.constant dense<0.000000e+00> : vector<2x8x8xf32>
    %62 = tpu.matmul %59, %60, %cst_20 {dimension_numbers = #tpu.dot_dimension_numbers<[2], [2], [1], [1], [0, 0, 0, 1, 1, 1], [0], [0]>} : vector<2x8x16xf32>, vector<2x8x16xf32>, vector<2x8x8xf32> -> vector<2x8x8xf32>
    "tpu.trace_stop"() : () -> ()
    %cst_21 = arith.constant dense<0xFF800000> : vector<2x8xf32>
    %63 = vector.multi_reduction <maximumf>, %62, %cst_21 [2] : vector<2x8x8xf32> to vector<2x8xf32>
    %64 = vector.shape_cast %63 : vector<2x8xf32> to vector<2x8x1xf32>
    %65 = vector.broadcast %64 : vector<2x8x1xf32> to vector<2x8x8xf32>
    %66 = arith.subf %62, %65 : vector<2x8x8xf32>
    %67 = math.exp %66 : vector<2x8x8xf32>
    %cst_22 = arith.constant dense<0.000000e+00> : vector<2x8xf32>
    %68 = vector.multi_reduction <add>, %67, %cst_22 [2] : vector<2x8x8xf32> to vector<2x8xf32>
    %69 = vector.shape_cast %68 : vector<2x8xf32> to vector<2x8x1xf32>
    %70 = vector.broadcast %69 : vector<2x8x1xf32> to vector<2x8x8xf32>
    %71 = arith.divf %67, %70 : vector<2x8x8xf32>
    "tpu.trace_start"() <{level = 10 : i32, message = "bnm,bmd->bnd"}> : () -> ()
    %cst_23 = arith.constant dense<0.000000e+00> : vector<2x8x16xf32>
    %72 = tpu.matmul %71, %61, %cst_23 {dimension_numbers = #tpu.dot_dimension_numbers<[2], [1], [1], [2], [0, 0, 0, 1, 1, 2], [0], [0]>} : vector<2x8x8xf32>, vector<2x8x16xf32>, vector<2x8x16xf32> -> vector<2x8x16xf32>
    "tpu.trace_stop"() : () -> ()
    %73 = tpu.concatenate %56, %72 in 2 : vector<2x8x16xf32>, vector<2x8x16xf32> -> vector<2x8x32xf32>
    %74 = vector.shape_cast %73 : vector<2x8x32xf32> to vector<16x32xf32>
    %c0_24 = arith.constant 0 : index
    %c0_25 = arith.constant 0 : index
    %c0_26 = arith.constant 0 : index
    %75 = vector.load %arg5[%c0_24, %c0_25, %c0_26] : memref<1x32x32xf32, #tpu.memory_space<vmem>>, vector<1x32x32xf32>
    %76 = vector.shape_cast %75 : vector<1x32x32xf32> to vector<32x32xf32>
    %cst_27 = arith.constant dense<0.000000e+00> : vector<16x32xf32>
    %77 = tpu.matmul %74, %76, %cst_27 {dimension_numbers = #tpu.dot_dimension_numbers<[1], [0], [0], [1], [0, 0, 1, 1], [], []>} : vector<16x32xf32>, vector<32x32xf32>, vector<16x32xf32> -> vector<16x32xf32>
    %78 = vector.broadcast %8 : vector<1x32xf32> to vector<16x32xf32>
    %79 = arith.addf %77, %78 : vector<16x32xf32>
    %80 = vector.shape_cast %79 : vector<16x32xf32> to vector<2x8x32xf32>
    %81 = arith.addf %3, %80 : vector<2x8x32xf32>
    %cst_28 = arith.constant dense<0.000000e+00> : vector<2x8xf32>
    %82 = vector.multi_reduction <add>, %81, %cst_28 [2] : vector<2x8x32xf32> to vector<2x8xf32>
    %83 = vector.shape_cast %82 : vector<2x8xf32> to vector<2x8x1xf32>
    %cst_29 = arith.constant 3.200000e+01 : f32
    %84 = vector.broadcast %cst_29 : f32 to vector<2x8x1xf32>
    %85 = arith.divf %83, %84 : vector<2x8x1xf32>
    %86 = vector.broadcast %85 : vector<2x8x1xf32> to vector<2x8x32xf32>
    %87 = arith.subf %81, %86 : vector<2x8x32xf32>
    %88 = arith.mulf %87, %87 : vector<2x8x32xf32>
    %cst_30 = arith.constant dense<0.000000e+00> : vector<2x8xf32>
    %89 = vector.multi_reduction <add>, %88, %cst_30 [2] : vector<2x8x32xf32> to vector<2x8xf32>
    %90 = vector.shape_cast %89 : vector<2x8xf32> to vector<2x8x1xf32>
    %cst_31 = arith.constant 3.200000e+01 : f32
    %91 = vector.broadcast %cst_31 : f32 to vector<2x8x1xf32>
    %92 = arith.divf %90, %91 : vector<2x8x1xf32>
    %93 = vector.broadcast %85 : vector<2x8x1xf32> to vector<2x8x32xf32>
    %94 = arith.subf %81, %93 : vector<2x8x32xf32>
    %cst_32 = arith.constant 9.99999974E-6 : f32
    %95 = vector.broadcast %cst_32 : f32 to vector<2x8x1xf32>
    %96 = arith.addf %92, %95 : vector<2x8x1xf32>
    %97 = math.rsqrt %96 : vector<2x8x1xf32>
    %98 = vector.broadcast %97 : vector<2x8x1xf32> to vector<2x8x32xf32>
    %99 = arith.mulf %94, %98 : vector<2x8x32xf32>
    %100 = vector.shape_cast %9 : vector<1x32xf32> to vector<1x1x32xf32>
    %101 = vector.broadcast %100 : vector<1x1x32xf32> to vector<2x8x32xf32>
    %102 = arith.mulf %99, %101 : vector<2x8x32xf32>
    %103 = vector.shape_cast %10 : vector<1x32xf32> to vector<1x1x32xf32>
    %104 = vector.broadcast %103 : vector<1x1x32xf32> to vector<2x8x32xf32>
    %105 = arith.addf %102, %104 : vector<2x8x32xf32>
    %106 = vector.shape_cast %105 : vector<2x8x32xf32> to vector<16x32xf32>
    %c0_33 = arith.constant 0 : index
    %c0_34 = arith.constant 0 : index
    %c0_35 = arith.constant 0 : index
    %107 = vector.load %arg6[%c0_33, %c0_34, %c0_35] : memref<1x32x64xf32, #tpu.memory_space<vmem>>, vector<1x32x64xf32>
    %108 = vector.shape_cast %107 : vector<1x32x64xf32> to vector<32x64xf32>
    %cst_36 = arith.constant dense<0.000000e+00> : vector<16x64xf32>
    %109 = tpu.matmul %106, %108, %cst_36 {dimension_numbers = #tpu.dot_dimension_numbers<[1], [0], [0], [1], [0, 0, 1, 1], [], []>} : vector<16x32xf32>, vector<32x64xf32>, vector<16x64xf32> -> vector<16x64xf32>
    %c0_37 = arith.constant 0 : index
    %c0_38 = arith.constant 0 : index
    %c0_39 = arith.constant 0 : index
    %110 = vector.load %arg3[%c0_37, %c0_38, %c0_39] : memref<1x1x64xf32, #tpu.memory_space<vmem>>, vector<1x1x64xf32>
    %111 = vector.shape_cast %110 : vector<1x1x64xf32> to vector<1x64xf32>
    %112 = vector.broadcast %111 : vector<1x64xf32> to vector<16x64xf32>
    %113 = arith.addf %109, %112 : vector<16x64xf32>
    %cst_40 = arith.constant 5.000000e-01 : f32
    %114 = vector.broadcast %cst_40 : f32 to vector<16x64xf32>
    %115 = arith.mulf %114, %113 : vector<16x64xf32>
    %cst_41 = arith.constant 0.707106769 : f32
    %116 = vector.broadcast %cst_41 : f32 to vector<16x64xf32>
    %117 = arith.mulf %113, %116 : vector<16x64xf32>
    %118 = math.erf %117 : vector<16x64xf32>
    %cst_42 = arith.constant 1.000000e+00 : f32
    %119 = vector.broadcast %cst_42 : f32 to vector<16x64xf32>
    %120 = arith.addf %119, %118 : vector<16x64xf32>
    %121 = arith.mulf %115, %120 : vector<16x64xf32>
    %c0_43 = arith.constant 0 : index
    %c0_44 = arith.constant 0 : index
    %c0_45 = arith.constant 0 : index
    %122 = vector.load %arg7[%c0_43, %c0_44, %c0_45] : memref<1x64x32xf32, #tpu.memory_space<vmem>>, vector<1x64x32xf32>
    %123 = vector.shape_cast %122 : vector<1x64x32xf32> to vector<64x32xf32>
    %cst_46 = arith.constant dense<0.000000e+00> : vector<16x32xf32>
    %124 = tpu.matmul %121, %123, %cst_46 {dimension_numbers = #tpu.dot_dimension_numbers<[1], [0], [0], [1], [0, 0, 1, 1], [], []>} : vector<16x64xf32>, vector<64x32xf32>, vector<16x32xf32> -> vector<16x32xf32>
    %125 = vector.broadcast %11 : vector<1x32xf32> to vector<16x32xf32>
    %126 = arith.addf %124, %125 : vector<16x32xf32>
    %127 = vector.shape_cast %126 : vector<16x32xf32> to vector<2x8x32xf32>
    %128 = arith.addf %81, %127 : vector<2x8x32xf32>
    %c0_47 = arith.constant 0 : index
    %c0_48 = arith.constant 0 : index
    %c0_49 = arith.constant 0 : index
    %129 = vector.load %arg8[%c0_47, %c0_48, %c0_49] : memref<2x8x32xf32, #tpu.memory_space<vmem>>, vector<2x8x32xf32>
    tpu.vector_store %arg8[%c0_47, %c0_48, %c0_49], %128 {strides = array<i32>} : memref<2x8x32xf32, #tpu.memory_space<vmem>>, vector<2x8x32xf32>,
    return
  }
  func.func @transform_0(%arg0: i32) -> (i32, i32, i32) {
    %c0_i32 = arith.constant 0 : i32
    %c0_i32_0 = arith.constant 0 : i32
    %c0_i32_1 = arith.constant 0 : i32
    %c0_i32_2 = arith.constant 0 : i32
    return %c0_i32, %c0_i32_0, %c0_i32_1 : i32, i32, i32
  }
  func.func @transform_1(%arg0: i32) -> (i32, i32, i32) {
    %c0_i32 = arith.constant 0 : i32
    %c0_i32_0 = arith.constant 0 : i32
    %c0_i32_1 = arith.constant 0 : i32
    return %arg0, %c0_i32, %c0_i32_0 : i32, i32, i32
  }
  func.func @transform_2(%arg0: i32) -> (i32, i32, i32) {
    %c0_i32 = arith.constant 0 : i32
    %c0_i32_0 = arith.constant 0 : i32
    %c0_i32_1 = arith.constant 0 : i32
    return %arg0, %c0_i32, %c0_i32_0 : i32, i32, i32
  }
  func.func @transform_3(%arg0: i32) -> (i32, i32, i32) {
    %c0_i32 = arith.constant 0 : i32
    %c0_i32_0 = arith.constant 0 : i32
    %c0_i32_1 = arith.constant 0 : i32
    return %arg0, %c0_i32, %c0_i32_0 : i32, i32, i32
  }
  func.func @transform_4(%arg0: i32) -> (i32, i32, i32) {
    %c0_i32 = arith.constant 0 : i32
    %c0_i32_0 = arith.constant 0 : i32
    %c0_i32_1 = arith.constant 0 : i32
    return %arg0, %c0_i32, %c0_i32_0 : i32, i32, i32
  }
  func.func @transform_5(%arg0: i32) -> (i32, i32, i32) {
    %c0_i32 = arith.constant 0 : i32
    %c0_i32_0 = arith.constant 0 : i32
    %c0_i32_1 = arith.constant 0 : i32
    return %arg0, %c0_i32, %c0_i32_0 : i32, i32, i32
  }
  func.func @transform_6(%arg0: i32) -> (i32, i32, i32) {
    %c0_i32 = arith.constant 0 : i32
    %c0_i32_0 = arith.constant 0 : i32
    %c0_i32_1 = arith.constant 0 : i32
    return %arg0, %c0_i32, %c0_i32_0 : i32, i32, i32
  }
  func.func @transform_7(%arg0: i32) -> (i32, i32, i32) {
    %c0_i32 = arith.constant 0 : i32
    %c0_i32_0 = arith.constant 0 : i32
    %c0_i32_1 = arith.constant 0 : i32
    %c0_i32_2 = arith.constant 0 : i32
    return %c0_i32, %c0_i32_0, %c0_i32_1 : i32, i32, i32
  }
}

</mosaic_0001>

<llo_original>
// kernel: tpu_custom_call.1
$region0: #{tpu_custom_call.1}
  #allocation0 [shape = 'u32[]', space=smem, size = 0x4, offset = 0x4, fixed_abs, tag = 'smem constant byte address 0x4 - core index']
  #allocation1 [shape = 'u32[72,128]{1,0:T(1,128)}', space=vmem, size = 0x9000, scoped, tag = 'internal scratch']
  %s0 = inlined_call_operand.vmem [shape: f32[2,8,32], index: 0, kind: input, shape index: {}]
  %s1 = inlined_call_operand.vmem [shape: f32[2,6,32], index: 1, kind: input, shape index: {}]
  %s2 = inlined_call_operand.vmem [shape: f32[2,1,64], index: 2, kind: input, shape index: {}]
  %s3 = inlined_call_operand.vmem [shape: f32[2,32,96], index: 3, kind: input, shape index: {}]
  %s4 = inlined_call_operand.vmem [shape: f32[2,32,32], index: 4, kind: input, shape index: {}]
  %s5 = inlined_call_operand.vmem [shape: f32[2,32,64], index: 5, kind: input, shape index: {}]
  %s6 = inlined_call_operand.vmem [shape: f32[2,64,32], index: 6, kind: input, shape index: {}]
  %s7 = inlined_call_operand.hbm [shape: f32[2,8,32], index: 7, kind: output, shape index: {}]
  %s8 = sld [smem:[#allocation0]]
  $region65: #{tpu_custom_call.1} parent=0
    _
  %s10 = ssub.s32 1, %s8
  %s11 = scalar_select 0, %s10, %s8
  $region1: #{tpu_custom_call.1} parent=0
    #allocation2 [shape = 'u8[8192]{0}', space=vmem, size = 0x2000, scoped, tag = 'output window, operand 0, single buffered']
    #allocation3 [shape = 's32[2]{0}', space=sflag, size = 0x8, scoped, tag = 'scoped memory for tpu_custom_call.1']
    %12 = vsyncpa [#allocation3], 0
    loop: start=0, step=1, limit=4
    $region2: #{tpu_custom_call.1} parent=1 // loop_pre_header
      _
    $region3: #{tpu_custom_call.1} parent=1 // loop_header
      %s14 = sphi 0, %s18
      %p15 = scmp.ge.s32.totalorder %s14, 4
      %s22 = sphi 0, %s22
      %s24 = sphi 0, %s22
      %s25 = sphi 0, %s24
      %s39 = sphi 0, %s25
      %s45 = sphi 0, %s47
      %s48 = sphi 0, %s45
      %s49 = sphi 0, %s48
      %s65 = sphi 0, %s49
      %s71 = sphi 0, %s73
      %s74 = sphi 0, %s71
      %s75 = sphi 0, %s74
      %s91 = sphi 0, %s75
      %s97 = sphi 0, %s99
      %s100 = sphi 0, %s97
      %s101 = sphi 0, %s100
      %s117 = sphi 0, %s101
      %s123 = sphi 0, %s125
      %s126 = sphi 0, %s123
      %s127 = sphi 0, %s126
      %s143 = sphi 0, %s127
      %s149 = sphi 0, %s151
      %s152 = sphi 0, %s149
      %s153 = sphi 0, %s152
      %s169 = sphi 0, %s153
      %s175 = sphi 0, %s177
      %s178 = sphi 0, %s175
      %s179 = sphi 0, %s178
      %s195 = sphi 0, %s179
      %s199 = sphi 0, %s199
      %s201 = sphi 0, %s199
      %s202 = sphi 0, %s201
      %s216 = sphi 0, %s202
    $region4: #{tpu_custom_call.1} parent=1 // loop_header_branch
      %17 = sbr.rel (%p15) target = $region8
    $region5: #{tpu_custom_call.1} parent=1 // loop_body
      %s19 = ssub.s32 %s14, 1
      %s20 = ssub.s32 %s14, 2
      %s21 = sadd.s32 %s14, 1
      %s23 = sadd.s32 %s22, 1
      %p26 = scmp.eq.s32.totalorder %s14, 1
      %p27 = scmp.ne.s32.totalorder %s22, %s24
      %p28 = scmp.eq.s32.totalorder %s14, 0
      %p29 = por %p27, %p28
      %p30 = scmp.ne.s32.totalorder %s22, %s24
      %p31 = scmp.eq.s32.totalorder %s19, 1
      %p32 = por %p30, %p31
      %p33 = scmp.ne.s32.totalorder %s24, %s25
      %p34 = scmp.eq.s32.totalorder %s19, 0
      %p35 = por %p33, %p34
      %p36 = scmp.ne.s32.totalorder %s24, %s25
      %p37 = scmp.eq.s32.totalorder %s20, 1
      %p38 = por %p36, %p37
      %p40 = scmp.ne.s32.totalorder %s25, %s39
      %p41 = scmp.eq.s32.totalorder %s20, 0
      %p42 = por %p40, %p41
      %s43 = ssub.s32 %s14, %s21
      %p44 = scmp.eq.s32.totalorder %s43, 0
      %s46 = sadd.s32 %s45, 1
      %s47 = scalar_select %p44, %s45, %s46
      %p50 = pneg %p44
      %p51 = scmp.eq.s32.totalorder %s14, 1
      %p52 = por %p50, %p51
      %p53 = scmp.ne.s32.totalorder %s45, %s48
      %p54 = scmp.eq.s32.totalorder %s14, 0
      %p55 = por %p53, %p54
      %p56 = scmp.ne.s32.totalorder %s45, %s48
      %p57 = scmp.eq.s32.totalorder %s19, 1
      %p58 = por %p56, %p57
      %p59 = scmp.ne.s32.totalorder %s48, %s49
      %p60 = scmp.eq.s32.totalorder %s19, 0
      %p61 = por %p59, %p60
      %p62 = scmp.ne.s32.totalorder %s48, %s49
      %p63 = scmp.eq.s32.totalorder %s20, 1
      %p64 = por %p62, %p63
      %p66 = scmp.ne.s32.totalorder %s49, %s65
      %p67 = scmp.eq.s32.totalorder %s20, 0
      %p68 = por %p66, %p67
      %s69 = ssub.s32 %s14, %s21
      %p70 = scmp.eq.s32.totalorder %s69, 0
      %s72 = sadd.s32 %s71, 1
      %s73 = scalar_select %p70, %s71, %s72
      %p76 = pneg %p70
      %p77 = scmp.eq.s32.totalorder %s14, 1
      %p78 = por %p76, %p77
      %p79 = scmp.ne.s32.totalorder %s71, %s74
      %p80 = scmp.eq.s32.totalorder %s14, 0
      %p81 = por %p79, %p80
      %p82 = scmp.ne.s32.totalorder %s71, %s74
      %p83 = scmp.eq.s32.totalorder %s19, 1
      %p84 = por %p82, %p83
      %p85 = scmp.ne.s32.totalorder %s74, %s75
      %p86 = scmp.eq.s32.totalorder %s19, 0
      %p87 = por %p85, %p86
      %p88 = scmp.ne.s32.totalorder %s74, %s75
      %p89 = scmp.eq.s32.totalorder %s20, 1
      %p90 = por %p88, %p89
      %p92 = scmp.ne.s32.totalorder %s75, %s91
      %p93 = scmp.eq.s32.totalorder %s20, 0
      %p94 = por %p92, %p93
      %s95 = ssub.s32 %s14, %s21
      %p96 = scmp.eq.s32.totalorder %s95, 0
      %s98 = sadd.s32 %s97, 1
      %s99 = scalar_select %p96, %s97, %s98
      %p102 = pneg %p96
      %p103 = scmp.eq.s32.totalorder %s14, 1
      %p104 = por %p102, %p103
      %p105 = scmp.ne.s32.totalorder %s97, %s100
      %p106 = scmp.eq.s32.totalorder %s14, 0
      %p107 = por %p105, %p106
      %p108 = scmp.ne.s32.totalorder %s97, %s100
      %p109 = scmp.eq.s32.totalorder %s19, 1
      %p110 = por %p108, %p109
      %p111 = scmp.ne.s32.totalorder %s100, %s101
      %p112 = scmp.eq.s32.totalorder %s19, 0
      %p113 = por %p111, %p112
      %p114 = scmp.ne.s32.totalorder %s100, %s101
      %p115 = scmp.eq.s32.totalorder %s20, 1
      %p116 = por %p114, %p115
      %p118 = scmp.ne.s32.totalorder %s101, %s117
      %p119 = scmp.eq.s32.totalorder %s20, 0
      %p120 = por %p118, %p119
      %s121 = ssub.s32 %s14, %s21
      %p122 = scmp.eq.s32.totalorder %s121, 0
      %s124 = sadd.s32 %s123, 1
      %s125 = scalar_select %p122, %s123, %s124
      %p128 = pneg %p122
      %p129 = scmp.eq.s32.totalorder %s14, 1
      %p130 = por %p128, %p129
      %p131 = scmp.ne.s32.totalorder %s123, %s126
      %p132 = scmp.eq.s32.totalorder %s14, 0
      %p133 = por %p131, %p132
      %p134 = scmp.ne.s32.totalorder %s123, %s126
      %p135 = scmp.eq.s32.totalorder %s19, 1
      %p136 = por %p134, %p135
      %p137 = scmp.ne.s32.totalorder %s126, %s127
      %p138 = scmp.eq.s32.totalorder %s19, 0
      %p139 = por %p137, %p138
      %p140 = scmp.ne.s32.totalorder %s126, %s127
      %p141 = scmp.eq.s32.totalorder %s20, 1
      %p142 = por %p140, %p141
      %p144 = scmp.ne.s32.totalorder %s127, %s143
      %p145 = scmp.eq.s32.totalorder %s20, 0
      %p146 = por %p144, %p145
      %s147 = ssub.s32 %s14, %s21
      %p148 = scmp.eq.s32.totalorder %s147, 0
      %s150 = sadd.s32 %s149, 1
      %s151 = scalar_select %p148, %s149, %s150
      %p154 = pneg %p148
      %p155 = scmp.eq.s32.totalorder %s14, 1
      %p156 = por %p154, %p155
      %p157 = scmp.ne.s32.totalorder %s149, %s152
      %p158 = scmp.eq.s32.totalorder %s14, 0
      %p159 = por %p157, %p158
      %p160 = scmp.ne.s32.totalorder %s149, %s152
      %p161 = scmp.eq.s32.totalorder %s19, 1
      %p162 = por %p160, %p161
      %p163 = scmp.ne.s32.totalorder %s152, %s153
      %p164 = scmp.eq.s32.totalorder %s19, 0
      %p165 = por %p163, %p164
      %p166 = scmp.ne.s32.totalorder %s152, %s153
      %p167 = scmp.eq.s32.totalorder %s20, 1
      %p168 = por %p166, %p167
      %p170 = scmp.ne.s32.totalorder %s153, %s169
      %p171 = scmp.eq.s32.totalorder %s20, 0
      %p172 = por %p170, %p171
      %s173 = ssub.s32 %s14, %s21
      %p174 = scmp.eq.s32.totalorder %s173, 0
      %s176 = sadd.s32 %s175, 1
      %s177 = scalar_select %p174, %s175, %s176
      %p180 = pneg %p174
      %p181 = scmp.eq.s32.totalorder %s14, 1
      %p182 = por %p180, %p181
      %p183 = scmp.ne.s32.totalorder %s175, %s178
      %p184 = scmp.eq.s32.totalorder %s14, 0
      %p185 = por %p183, %p184
      %p186 = scmp.ne.s32.totalorder %s175, %s178
      %p187 = scmp.eq.s32.totalorder %s19, 1
      %p188 = por %p186, %p187
      %p189 = scmp.ne.s32.totalorder %s178, %s179
      %p190 = scmp.eq.s32.totalorder %s19, 0
      %p191 = por %p189, %p190
      %p192 = scmp.ne.s32.totalorder %s178, %s179
      %p193 = scmp.eq.s32.totalorder %s20, 1
      %p194 = por %p192, %p193
      %p196 = scmp.ne.s32.totalorder %s179, %s195
      %p197 = scmp.eq.s32.totalorder %s20, 0
      %p198 = por %p196, %p197
      %s200 = sadd.s32 %s199, 1
      %p203 = scmp.eq.s32.totalorder %s14, 1
      %p204 = scmp.ne.s32.totalorder %s199, %s201
      %p205 = scmp.eq.s32.totalorder %s14, 0
      %p206 = por %p204, %p205
      %p207 = scmp.ne.s32.totalorder %s199, %s201
      %p208 = scmp.eq.s32.totalorder %s19, 1
      %p209 = por %p207, %p208
      %p210 = scmp.ne.s32.totalorder %s201, %s202
      %p211 = scmp.eq.s32.totalorder %s19, 0
      %p212 = por %p210, %p211
      %p213 = scmp.ne.s32.totalorder %s201, %s202
      %p214 = scmp.eq.s32.totalorder %s20, 1
      %p215 = por %p213, %p214
      %p217 = scmp.ne.s32.totalorder %s202, %s216
      %p218 = scmp.eq.s32.totalorder %s20, 0
      %p219 = por %p217, %p218
      %p220 = scmp.le.s32.totalorder 1, %s14
      %p221 = scmp.lt.s32.totalorder %s14, 3
      %p222 = pnand %p220, %p221
      %p223 = pneg %p222
      // Predicated region
      $region9: #{tpu_custom_call.1} parent=5 // pred_check
        _
      $region10: #{tpu_custom_call.1} parent=5 // pred_check_branch
        %225 = sbr.rel (%p222) target = $region12
      $region11: #{tpu_custom_call.1} parent=5 // pred_region
        %s226 = ssub.s32 %s14, 1
        // Predicated region
        $region13: #{tpu_custom_call.1} parent=11 // pred_check
          %p227 = pneg %p35
        $region14: #{tpu_custom_call.1} parent=11 // pred_check_branch
          %229 = sbr.rel (%p227) target = $region16
        $region15: #{tpu_custom_call.1} parent=11 // pred_region
          _
        $region16: #{tpu_custom_call.1} parent=11 // pred_fallthru
          _
      $region12: #{tpu_custom_call.1} parent=5 // pred_fallthru
        _
      %p230 = scmp.lt.s32.totalorder %s14, 2
      // Predicated region
      $region17: #{tpu_custom_call.1} parent=5 // pred_check
        %p231 = pneg %p230
      $region18: #{tpu_custom_call.1} parent=5 // pred_check_branch
        %233 = sbr.rel (%p231) target = $region20
      $region19: #{tpu_custom_call.1} parent=5 // pred_region
        // Predicated region
        $region21: #{tpu_custom_call.1} parent=19 // pred_check
          %p234 = pneg %p55
        $region22: #{tpu_custom_call.1} parent=19 // pred_check_branch
          %236 = sbr.rel (%p234) target = $region24
        $region23: #{tpu_custom_call.1} parent=19 // pred_region
          %p237 = scmp.lt.s32.totalorder %s14, 1
          %s238 = scalar_select %p237, %s14, 1
          %s239 = smul.addr %s238, 8
          %s240 = scalar_lea.vmem %s1, %s239
        $region24: #{tpu_custom_call.1} parent=19 // pred_fallthru
          _
        // Predicated region
        $region25: #{tpu_custom_call.1} parent=19 // pred_check
          %p241 = pneg %p81
        $region26: #{tpu_custom_call.1} parent=19 // pred_check_branch
          %243 = sbr.rel (%p241) target = $region28
        $region27: #{tpu_custom_call.1} parent=19 // pred_region
          %p244 = scmp.lt.s32.totalorder %s14, 1
          %s245 = scalar_select %p244, %s14, 1
          %s246 = scalar_lea.vmem %s2, %s245
        $region28: #{tpu_custom_call.1} parent=19 // pred_fallthru
          _
        // Predicated region
        $region29: #{tpu_custom_call.1} parent=19 // pred_check
          %p247 = pneg %p107
        $region30: #{tpu_custom_call.1} parent=19 // pred_check_branch
          %249 = sbr.rel (%p247) target = $region32
        $region31: #{tpu_custom_call.1} parent=19 // pred_region
          %p250 = scmp.lt.s32.totalorder %s14, 1
          %s251 = scalar_select %p250, %s14, 1
          %s252 = smul.addr %s251, 4
          %s253 = smul.addr %s252, 8
          %s254 = scalar_lea.vmem %s3, %s253
        $region32: #{tpu_custom_call.1} parent=19 // pred_fallthru
          _
        // Predicated region
        $region33: #{tpu_custom_call.1} parent=19 // pred_check
          %p255 = pneg %p133
        $region34: #{tpu_custom_call.1} parent=19 // pred_check_branch
          %257 = sbr.rel (%p255) target = $region36
        $region35: #{tpu_custom_call.1} parent=19 // pred_region
          %p258 = scmp.lt.s32.totalorder %s14, 1
          %s259 = scalar_select %p258, %s14, 1
          %s260 = smul.addr %s259, 4
          %s261 = smul.addr %s260, 8
          %s262 = scalar_lea.vmem %s4, %s261
        $region36: #{tpu_custom_call.1} parent=19 // pred_fallthru
          _
        // Predicated region
        $region37: #{tpu_custom_call.1} parent=19 // pred_check
          %p263 = pneg %p159
        $region38: #{tpu_custom_call.1} parent=19 // pred_check_branch
          %265 = sbr.rel (%p263) target = $region40
        $region39: #{tpu_custom_call.1} parent=19 // pred_region
          %p266 = scmp.lt.s32.totalorder %s14, 1
          %s267 = scalar_select %p266, %s14, 1
          %s268 = smul.addr %s267, 4
          %s269 = smul.addr %s268, 8
          %s270 = scalar_lea.vmem %s5, %s269
        $region40: #{tpu_custom_call.1} parent=19 // pred_fallthru
          _
        // Predicated region
        $region41: #{tpu_custom_call.1} parent=19 // pred_check
          %p271 = pneg %p185
        $region42: #{tpu_custom_call.1} parent=19 // pred_check_branch
          %273 = sbr.rel (%p271) target = $region44
        $region43: #{tpu_custom_call.1} parent=19 // pred_region
          %p274 = scmp.lt.s32.totalorder %s14, 1
          %s275 = scalar_select %p274, %s14, 1
          %s276 = smul.addr %s275, 8
          %s277 = smul.addr %s276, 8
          %s278 = scalar_lea.vmem %s6, %s277
        $region44: #{tpu_custom_call.1} parent=19 // pred_fallthru
          _
      $region20: #{tpu_custom_call.1} parent=5 // pred_fallthru
        _
      %p279 = scmp.le.s32.totalorder 1, %s14
      %p280 = scmp.lt.s32.totalorder %s14, 3
      %p281 = pnand %p279, %p280
      %p282 = pneg %p281
      // Predicated region
      $region45: #{tpu_custom_call.1} parent=5 // pred_check
        _
      $region46: #{tpu_custom_call.1} parent=5 // pred_check_branch
        %284 = sbr.rel (%p281) target = $region48
      $region47: #{tpu_custom_call.1} parent=5 // pred_region
        %s285 = ssub.s32 %s14, 1
        %p286 = pneg %p35
        %p287 = pneg %p32
        %p288 = scmp.lt.s32.totalorder %s19, 1
        %s289 = scalar_select %p288, %s19, 1
        %s290 = smul.addr %s289, 8
        %s291 = scalar_lea.vmem %s1, %s290
        %p292 = pneg %p61
        %p293 = pneg %p58
        %p294 = scmp.lt.s32.totalorder %s19, 1
        %s295 = scalar_select %p294, %s19, 1
        %s296 = scalar_lea.vmem %s2, %s295
        %p297 = pneg %p87
        %p298 = pneg %p84
        %p299 = scmp.lt.s32.totalorder %s19, 1
        %s300 = scalar_select %p299, %s19, 1
        %s301 = smul.addr %s300, 4
        %s302 = smul.addr %s301, 8
        %s303 = scalar_lea.vmem %s3, %s302
        %p304 = pneg %p113
        %p305 = pneg %p110
        %p306 = scmp.lt.s32.totalorder %s19, 1
        %s307 = scalar_select %p306, %s19, 1
        %s308 = smul.addr %s307, 4
        %s309 = smul.addr %s308, 8
        %s310 = scalar_lea.vmem %s4, %s309
        %p311 = pneg %p139
        %p312 = pneg %p136
        %p313 = scmp.lt.s32.totalorder %s19, 1
        %s314 = scalar_select %p313, %s19, 1
        %s315 = smul.addr %s314, 4
        %s316 = smul.addr %s315, 8
        %s317 = scalar_lea.vmem %s5, %s316
        %p318 = pneg %p165
        %p319 = pneg %p162
        %p320 = scmp.lt.s32.totalorder %s19, 1
        %s321 = scalar_select %p320, %s19, 1
        %s322 = smul.addr %s321, 8
        %s323 = smul.addr %s322, 8
        %s324 = scalar_lea.vmem %s6, %s323
        %p325 = pneg %p191
        %p326 = pneg %p188
        %p327 = pneg %p212
        %p328 = pneg %p209
        %p329 = scmp.lt.s32.totalorder %s19, 1
        %s330 = scalar_select %p329, %s19, 1
        %s331 = smul.addr %s330, 8
        %s332 = scalar_lea.vmem %s1, %s331
        %p333 = scmp.lt.s32.totalorder %s19, 1
        %s334 = scalar_select %p333, %s19, 1
        %s335 = scalar_lea.vmem %s2, %s334
        %p336 = scmp.lt.s32.totalorder %s19, 1
        %s337 = scalar_select %p336, %s19, 1
        %s338 = smul.addr %s337, 4
        %s339 = smul.addr %s338, 8
        %s340 = scalar_lea.vmem %s3, %s339
        %p341 = scmp.lt.s32.totalorder %s19, 1
        %s342 = scalar_select %p341, %s19, 1
        %s343 = smul.addr %s342, 4
        %s344 = smul.addr %s343, 8
        %s345 = scalar_lea.vmem %s4, %s344
        %p346 = scmp.lt.s32.totalorder %s19, 1
        %s347 = scalar_select %p346, %s19, 1
        %s348 = smul.addr %s347, 4
        %s349 = smul.addr %s348, 8
        %s350 = scalar_lea.vmem %s5, %s349
        %p351 = scmp.lt.s32.totalorder %s19, 1
        %s352 = scalar_select %p351, %s19, 1
        %s353 = smul.addr %s352, 8
        %s354 = smul.addr %s353, 8
        %s355 = scalar_lea.vmem %s6, %s354
        %p356 = scmp.eq.s32.totalorder %s19, 0
        // Predicated region
        $region49: #{tpu_custom_call.1} parent=47 // pred_check
          %p357 = pneg %p356
        $region50: #{tpu_custom_call.1} parent=47 // pred_check_branch
          %359 = sbr.rel (%p357) target = $region52
        $region51: #{tpu_custom_call.1} parent=47 // pred_region
          %v360 = vld [vmem:[%s0] sm:$0xff]
          %v361 = vld [vmem:[%s0 + $0x8] sm:$0xff]
          %vm362 = vcmask 261120
          %363 = vst.msk [vmem:[#allocation2] sm:$0xff] %vm362, %v360
          %364 = vst.msk [vmem:[#allocation2 + $0x8] sm:$0xff] %vm362, %v361
        $region52: #{tpu_custom_call.1} parent=47 // pred_fallthru
          _
        %v365 = vld [vmem:[#allocation2] sm:$0xff]
        %v366 = vld [vmem:[#allocation2 + $0x8] sm:$0xff]
        %v367 = vld [vmem:[%s332] sm:$0x3f]
        %vm368 = vcmask 261120
        %v369 = vsel %vm368, %v365, 0.0
        %370 = vadd.xlane.f32.xlu0 %v369
        %v371 = vpop.xlane.xlu0 %370
        %v372 = vsel %vm368, %v366, 0.0
        %373 = vadd.xlane.f32.xlu0 %v372
        %v374 = vpop.xlane.xlu0 %373
        %v375 = vrcp.pop 32.0
        %v376 = vmul.f32 32.0, %v375
        %v377 = vsub.f32 1.0, %v376
        %v378 = vmul.f32 %v375, %v377
        %v379 = vadd.f32 %v375, %v378
        %vm380 = vweird.f32 %v375
        %v381 = vsel %vm380, %v375, %v379
        %v382 = vmul.f32 %v371, %v381
        %v383 = vmul.f32 %v374, %v381
        %v384 = vsub.f32 %v365, %v382
        %v385 = vsub.f32 %v366, %v383
        %v386 = vmul.f32 %v384, %v384
        %v387 = vmul.f32 %v385, %v385
        %v388 = vsel %vm368, %v386, 0.0
        %389 = vadd.xlane.f32.xlu0 %v388
        %v390 = vpop.xlane.xlu0 %389
        %v391 = vsel %vm368, %v387, 0.0
        %392 = vadd.xlane.f32.xlu0 %v391
        %v393 = vpop.xlane.xlu0 %392
        %v394 = vmul.f32 %v390, %v381
        %v395 = vmul.f32 %v393, %v381
        %v396 = vadd.f32 %v394, 1e-05
        %v397 = vadd.f32 %v395, 1e-05
        %v398 = vrsqrt.pop %v396
        %v399 = vmul.f32 %v398, %v396
        %v400 = vmul.f32 %v399, %v398
        %v401 = vmul.f32 0.5, %v400
        %v402 = vsub.f32 1.5, %v401
        %v403 = vmul.f32 %v398, %v402
        %vm404 = vweird.f32 %v396
        %vm405 = vweird.f32 %v398
        %vm406 = vmor %vm404, %vm405
        %v407 = vsel %vm406, %v398, %v403
        %v408 = vrsqrt.pop %v397
        %v409 = vmul.f32 %v408, %v397
        %v410 = vmul.f32 %v409, %v408
        %v411 = vmul.f32 0.5, %v410
        %v412 = vsub.f32 1.5, %v411
        %v413 = vmul.f32 %v408, %v412
        %vm414 = vweird.f32 %v397
        %vm415 = vweird.f32 %v408
        %vm416 = vmor %vm414, %vm415
        %v417 = vsel %vm416, %v408, %v413
        %v418 = vmul.f32 %v384, %v407
        %v419 = vmul.f32 %v385, %v417
        %v420 = vperm.slane %v367, 0
        %v421 = vmul.f32 %v418, %v420
        %v422 = vmul.f32 %v419, %v420
        %v423 = vperm.slane %v367, 1
        %v424 = vadd.f32 %v421, %v423
        %v425 = vadd.f32 %v422, %v423
        %v426 = vld [vmem:[%s340] sm:$0xff]
        %v427 = vld [vmem:[%s340 + $0x8] sm:$0xff]
        %v428 = vld [vmem:[%s340 + $0x10] sm:$0xff]
        %v429 = vld [vmem:[%s340 + $0x18] sm:$0xff]
        %v431 = vsel %vm368, %v424, 0
        %v434 = vsel %vm368, %v425, 0
        %436 = vmatpush.msra.mxu0 0.0
        %437 = vmatpush.msra.mxu0 0.0
        %438 = vmatpush.msra.mxu0 0.0
        %439 = vmatpush.msra.mxu0 0.0
        %440 = vmatpush.msra.mxu0 0.0
        %441 = vmatpush.msra.mxu0 0.0
        %442 = vmatpush.msra.mxu0 0.0
        %443 = vmatpush.msra.mxu0 0.0
        %444 = vmatpush.msra.mxu0 0.0
        %445 = vmatpush.msra.mxu0 0.0
        %446 = vmatpush.msra.mxu0 0.0
        %447 = vmatpush.msra.mxu0 0.0
        %448 = vmatpush.msra.mxu0 %v429
        %449 = vmatpush.msra.mxu0 %v428
        %450 = vmatpush.msra.mxu0 %v427
        %451 = vmatpush.msra.mxu0 %v426
        %452 = vmatmul.f32.gmra.mxu0 %v431
        %v453 = vpop.f32.mrf.mxu0
        %v454 = vadd.f32 0.0, %v453
        %455 = vmatmul.f32.gmra.mxu0 %v434
        %v456 = vpop.f32.mrf.mxu0
        %v457 = vadd.f32 0.0, %v456
        %458 = vdwg.mxu0
        %v459 = vmul.f32 %v454, 0.25
        %v460 = vmul.f32 %v457, 0.25
        %462 = vrot.lane.b32.xlu0 %v454, 96
        %v463 = vpop.permute.xlu0 %462
        %vm464 = vcmask 130048
        %v466 = vsel %vm464, %v459, 0
        %v468 = vsel %vm464, %v463, 0
        %470 = vmatpush.xpose.msra.mxu0 0.0
        %471 = vmatpush.xpose.msra.mxu0 0.0
        %472 = vmatpush.xpose.msra.mxu0 0.0
        %473 = vmatpush.xpose.msra.mxu0 0.0
        %474 = vmatpush.xpose.msra.mxu0 0.0
        %475 = vmatpush.xpose.msra.mxu0 0.0
        %476 = vmatpush.xpose.msra.mxu0 0.0
        %477 = vmatpush.xpose.msra.mxu0 0.0
        %478 = vmatpush.xpose.msra.mxu0 0.0
        %479 = vmatpush.xpose.msra.mxu0 0.0
        %480 = vmatpush.xpose.msra.mxu0 0.0
        %481 = vmatpush.xpose.msra.mxu0 0.0
        %482 = vmatpush.xpose.msra.mxu0 0.0
        %483 = vmatpush.xpose.msra.mxu0 0.0
        %484 = vmatpush.xpose.msra.mxu0 0.0
        %485 = vmatpush.xpose.msra.mxu0 %v468
        %486 = vmatmul.f32.gmra.mxu0 %v466
        %v487 = vpop.f32.mrf.mxu0
        %v488 = vadd.f32 0.0, %v487
        %489 = vdwg.mxu0
        %491 = vrot.lane.b32.xlu0 %v457, 96
        %v492 = vpop.permute.xlu0 %491
        %v494 = vsel %vm464, %v460, 0
        %v496 = vsel %vm464, %v492, 0
        %498 = vmatpush.xpose.msra.mxu0 0.0
        %499 = vmatpush.xpose.msra.mxu0 0.0
        %500 = vmatpush.xpose.msra.mxu0 0.0
        %501 = vmatpush.xpose.msra.mxu0 0.0
        %502 = vmatpush.xpose.msra.mxu0 0.0
        %503 = vmatpush.xpose.msra.mxu0 0.0
        %504 = vmatpush.xpose.msra.mxu0 0.0
        %505 = vmatpush.xpose.msra.mxu0 0.0
        %506 = vmatpush.xpose.msra.mxu0 0.0
        %507 = vmatpush.xpose.msra.mxu0 0.0
        %508 = vmatpush.xpose.msra.mxu0 0.0
        %509 = vmatpush.xpose.msra.mxu0 0.0
        %510 = vmatpush.xpose.msra.mxu0 0.0
        %511 = vmatpush.xpose.msra.mxu0 0.0
        %512 = vmatpush.xpose.msra.mxu0 0.0
        %513 = vmatpush.xpose.msra.mxu0 %v496
        %514 = vmatmul.f32.gmra.mxu0 %v494
        %v515 = vpop.f32.mrf.mxu0
        %v516 = vadd.f32 0.0, %v515
        %517 = vdwg.mxu0
        %vm518 = vcmask 64512
        %v519 = vsel %vm518, %v488, -inf
        %520 = vmax.xlane.f32.xlu0 %v519
        %v521 = vpop.xlane.xlu0 %520
        %v522 = vsel %vm518, %v516, -inf
        %523 = vmax.xlane.f32.xlu0 %v522
        %v524 = vpop.xlane.xlu0 %523
        %v525 = vsub.f32 %v488, %v521
        %v526 = vsub.f32 %v516, %v524
        %v527 = vmul.f32 %v525, 1.442695
        %v528 = vpow.pop %v527
        %v529 = vmul.f32 %v526, 1.442695
        %v530 = vpow.pop %v529
        %v531 = vsel %vm518, %v528, 0.0
        %532 = vadd.xlane.f32.xlu0 %v531
        %v533 = vpop.xlane.xlu0 %532
        %v534 = vsel %vm518, %v530, 0.0
        %535 = vadd.xlane.f32.xlu0 %v534
        %v536 = vpop.xlane.xlu0 %535
        %v537 = vrcp.pop %v533
        %v538 = vmul.f32 %v533, %v537
        %v539 = vsub.f32 1.0, %v538
        %v540 = vmul.f32 %v537, %v539
        %v541 = vadd.f32 %v537, %v540
        %vm542 = vweird.f32 %v533
        %vm543 = vweird.f32 %v537
        %vm544 = vmor %vm542, %vm543
        %v545 = vsel %vm544, %v537, %v541
        %v546 = vand.u32 2147483647, %v533
        %vm547 = vcmp.eq.f32.partialorder %v546, 8.507059e+37
        %v548 = vand.u32 %v533, 2147483648
        %v549 = vor.u32 1.1754944e-38, %v548
        %v550 = vsel %vm547, %v549, %v545
        %v551 = vmul.f32 %v528, %v550
        %v552 = vrcp.pop %v536
        %v553 = vmul.f32 %v536, %v552
        %v554 = vsub.f32 1.0, %v553
        %v555 = vmul.f32 %v552, %v554
        %v556 = vadd.f32 %v552, %v555
        %vm557 = vweird.f32 %v536
        %vm558 = vweird.f32 %v552
        %vm559 = vmor %vm557, %vm558
        %v560 = vsel %vm559, %v552, %v556
        %v561 = vand.u32 2147483647, %v536
        %vm562 = vcmp.eq.f32.partialorder %v561, 8.507059e+37
        %v563 = vand.u32 %v536, 2147483648
        %v564 = vor.u32 1.1754944e-38, %v563
        %v565 = vsel %vm562, %v564, %v560
        %v566 = vmul.f32 %v530, %v565
        %567 = vrot.lane.b32.xlu0 %v454, 64
        %v568 = vpop.permute.xlu0 %567
        %v571 = vsel %vm518, %v551, 0
        %573 = vmatpush.msra.mxu0 0.0
        %574 = vmatpush.msra.mxu0 0.0
        %575 = vmatpush.msra.mxu0 0.0
        %576 = vmatpush.msra.mxu0 0.0
        %577 = vmatpush.msra.mxu0 0.0
        %578 = vmatpush.msra.mxu0 0.0
        %579 = vmatpush.msra.mxu0 0.0
        %580 = vmatpush.msra.mxu0 0.0
        %581 = vmatpush.msra.mxu0 0.0
        %582 = vmatpush.msra.mxu0 0.0
        %583 = vmatpush.msra.mxu0 0.0
        %584 = vmatpush.msra.mxu0 0.0
        %585 = vmatpush.msra.mxu0 0.0
        %586 = vmatpush.msra.mxu0 0.0
        %587 = vmatpush.msra.mxu0 0.0
        %588 = vmatpush.msra.mxu0 %v568
        %589 = vmatmul.f32.gmra.mxu0 %v571
        %v590 = vpop.f32.mrf.mxu0
        %v591 = vadd.f32 0.0, %v590
        %592 = vdwg.mxu0
        %593 = vrot.lane.b32.xlu0 %v457, 64
        %v594 = vpop.permute.xlu0 %593
        %v597 = vsel %vm518, %v566, 0
        %599 = vmatpush.msra.mxu0 0.0
        %600 = vmatpush.msra.mxu0 0.0
        %601 = vmatpush.msra.mxu0 0.0
        %602 = vmatpush.msra.mxu0 0.0
        %603 = vmatpush.msra.mxu0 0.0
        %604 = vmatpush.msra.mxu0 0.0
        %605 = vmatpush.msra.mxu0 0.0
        %606 = vmatpush.msra.mxu0 0.0
        %607 = vmatpush.msra.mxu0 0.0
        %608 = vmatpush.msra.mxu0 0.0
        %609 = vmatpush.msra.mxu0 0.0
        %610 = vmatpush.msra.mxu0 0.0
        %611 = vmatpush.msra.mxu0 0.0
        %612 = vmatpush.msra.mxu0 0.0
        %613 = vmatpush.msra.mxu0 0.0
        %614 = vmatpush.msra.mxu0 %v594
        %615 = vmatmul.f32.gmra.mxu0 %v597
        %v616 = vpop.f32.mrf.mxu0
        %v617 = vadd.f32 0.0, %v616
        %618 = vdwg.mxu0
        %619 = vrot.lane.b32.xlu0 %v459, 112
        %v620 = vpop.permute.xlu0 %619
        %621 = vrot.lane.b32.xlu0 %v454, 80
        %v622 = vpop.permute.xlu0 %621
        %v623 = vsel %vm464, %v620, 0
        %v625 = vsel %vm464, %v622, 0
        %627 = vmatpush.xpose.msra.mxu0 0.0
        %628 = vmatpush.xpose.msra.mxu0 0.0
        %629 = vmatpush.xpose.msra.mxu0 0.0
        %630 = vmatpush.xpose.msra.mxu0 0.0
        %631 = vmatpush.xpose.msra.mxu0 0.0
        %632 = vmatpush.xpose.msra.mxu0 0.0
        %633 = vmatpush.xpose.msra.mxu0 0.0
        %634 = vmatpush.xpose.msra.mxu0 0.0
        %635 = vmatpush.xpose.msra.mxu0 0.0
        %636 = vmatpush.xpose.msra.mxu0 0.0
        %637 = vmatpush.xpose.msra.mxu0 0.0
        %638 = vmatpush.xpose.msra.mxu0 0.0
        %639 = vmatpush.xpose.msra.mxu0 0.0
        %640 = vmatpush.xpose.msra.mxu0 0.0
        %641 = vmatpush.xpose.msra.mxu0 0.0
        %642 = vmatpush.xpose.msra.mxu0 %v625
        %643 = vmatmul.f32.gmra.mxu0 %v623
        %v644 = vpop.f32.mrf.mxu0
        %v645 = vadd.f32 0.0, %v644
        %646 = vdwg.mxu0
        %647 = vrot.lane.b32.xlu0 %v460, 112
        %v648 = vpop.permute.xlu0 %647
        %649 = vrot.lane.b32.xlu0 %v457, 80
        %v650 = vpop.permute.xlu0 %649
        %v651 = vsel %vm464, %v648, 0
        %v653 = vsel %vm464, %v650, 0
        %655 = vmatpush.xpose.msra.mxu0 0.0
        %656 = vmatpush.xpose.msra.mxu0 0.0
        %657 = vmatpush.xpose.msra.mxu0 0.0
        %658 = vmatpush.xpose.msra.mxu0 0.0
        %659 = vmatpush.xpose.msra.mxu0 0.0
        %660 = vmatpush.xpose.msra.mxu0 0.0
        %661 = vmatpush.xpose.msra.mxu0 0.0
        %662 = vmatpush.xpose.msra.mxu0 0.0
        %663 = vmatpush.xpose.msra.mxu0 0.0
        %664 = vmatpush.xpose.msra.mxu0 0.0
        %665 = vmatpush.xpose.msra.mxu0 0.0
        %666 = vmatpush.xpose.msra.mxu0 0.0
        %667 = vmatpush.xpose.msra.mxu0 0.0
        %668 = vmatpush.xpose.msra.mxu0 0.0
        %669 = vmatpush.xpose.msra.mxu0 0.0
        %670 = vmatpush.xpose.msra.mxu0 %v653
        %671 = vmatmul.f32.gmra.mxu0 %v651
        %v672 = vpop.f32.mrf.mxu0
        %v673 = vadd.f32 0.0, %v672
        %674 = vdwg.mxu0
        %v675 = vsel %vm518, %v645, -inf
        %676 = vmax.xlane.f32.xlu0 %v675
        %v677 = vpop.xlane.xlu0 %676
        %v678 = vsel %vm518, %v673, -inf
        %679 = vmax.xlane.f32.xlu0 %v678
        %v680 = vpop.xlane.xlu0 %679
        %v681 = vsub.f32 %v645, %v677
        %v682 = vsub.f32 %v673, %v680
        %v683 = vmul.f32 %v681, 1.442695
        %v684 = vpow.pop %v683
        %v685 = vmul.f32 %v682, 1.442695
        %v686 = vpow.pop %v685
        %v687 = vsel %vm518, %v684, 0.0
        %688 = vadd.xlane.f32.xlu0 %v687
        %v689 = vpop.xlane.xlu0 %688
        %v690 = vsel %vm518, %v686, 0.0
        %691 = vadd.xlane.f32.xlu0 %v690
        %v692 = vpop.xlane.xlu0 %691
        %v693 = vrcp.pop %v689
        %v694 = vmul.f32 %v689, %v693
        %v695 = vsub.f32 1.0, %v694
        %v696 = vmul.f32 %v693, %v695
        %v697 = vadd.f32 %v693, %v696
        %vm698 = vweird.f32 %v689
        %vm699 = vweird.f32 %v693
        %vm700 = vmor %vm698, %vm699
        %v701 = vsel %vm700, %v693, %v697
        %v702 = vand.u32 2147483647, %v689
        %vm703 = vcmp.eq.f32.partialorder %v702, 8.507059e+37
        %v704 = vand.u32 %v689, 2147483648
        %v705 = vor.u32 1.1754944e-38, %v704
        %v706 = vsel %vm703, %v705, %v701
        %v707 = vmul.f32 %v684, %v706
        %v708 = vrcp.pop %v692
        %v709 = vmul.f32 %v692, %v708
        %v710 = vsub.f32 1.0, %v709
        %v711 = vmul.f32 %v708, %v710
        %v712 = vadd.f32 %v708, %v711
        %vm713 = vweird.f32 %v692
        %vm714 = vweird.f32 %v708
        %vm715 = vmor %vm713, %vm714
        %v716 = vsel %vm715, %v708, %v712
        %v717 = vand.u32 2147483647, %v692
        %vm718 = vcmp.eq.f32.partialorder %v717, 8.507059e+37
        %v719 = vand.u32 %v692, 2147483648
        %v720 = vor.u32 1.1754944e-38, %v719
        %v721 = vsel %vm718, %v720, %v716
        %v722 = vmul.f32 %v686, %v721
        %723 = vrot.lane.b32.xlu0 %v454, 48
        %v724 = vpop.permute.xlu0 %723
        %v727 = vsel %vm518, %v707, 0
        %729 = vmatpush.msra.mxu0 0.0
        %730 = vmatpush.msra.mxu0 0.0
        %731 = vmatpush.msra.mxu0 0.0
        %732 = vmatpush.msra.mxu0 0.0
        %733 = vmatpush.msra.mxu0 0.0
        %734 = vmatpush.msra.mxu0 0.0
        %735 = vmatpush.msra.mxu0 0.0
        %736 = vmatpush.msra.mxu0 0.0
        %737 = vmatpush.msra.mxu0 0.0
        %738 = vmatpush.msra.mxu0 0.0
        %739 = vmatpush.msra.mxu0 0.0
        %740 = vmatpush.msra.mxu0 0.0
        %741 = vmatpush.msra.mxu0 0.0
        %742 = vmatpush.msra.mxu0 0.0
        %743 = vmatpush.msra.mxu0 0.0
        %744 = vmatpush.msra.mxu0 %v724
        %745 = vmatmul.f32.gmra.mxu0 %v727
        %v746 = vpop.f32.mrf.mxu0
        %v747 = vadd.f32 0.0, %v746
        %748 = vdwg.mxu0
        %749 = vrot.lane.b32.xlu0 %v457, 48
        %v750 = vpop.permute.xlu0 %749
        %v753 = vsel %vm518, %v722, 0
        %755 = vmatpush.msra.mxu0 0.0
        %756 = vmatpush.msra.mxu0 0.0
        %757 = vmatpush.msra.mxu0 0.0
        %758 = vmatpush.msra.mxu0 0.0
        %759 = vmatpush.msra.mxu0 0.0
        %760 = vmatpush.msra.mxu0 0.0
        %761 = vmatpush.msra.mxu0 0.0
        %762 = vmatpush.msra.mxu0 0.0
        %763 = vmatpush.msra.mxu0 0.0
        %764 = vmatpush.msra.mxu0 0.0
        %765 = vmatpush.msra.mxu0 0.0
        %766 = vmatpush.msra.mxu0 0.0
        %767 = vmatpush.msra.mxu0 0.0
        %768 = vmatpush.msra.mxu0 0.0
        %769 = vmatpush.msra.mxu0 0.0
        %770 = vmatpush.msra.mxu0 %v750
        %771 = vmatmul.f32.gmra.mxu0 %v753
        %v772 = vpop.f32.mrf.mxu0
        %v773 = vadd.f32 0.0, %v772
        %774 = vdwg.mxu0
        %777 = vrot.lane.b32.xlu0 %v747, 16
        %v778 = vpop.permute.xlu0 %777
        %779 = vrot.lane.b32.xlu0 %v773, 16
        %v780 = vpop.permute.xlu0 %779
        %v783 = vsel %vm464, %v591, %v778
        %v784 = vsel %vm464, %v617, %v780
        %v785 = vld [vmem:[%s345] sm:$0xff]
        %v786 = vld [vmem:[%s345 + $0x8] sm:$0xff]
        %v787 = vld [vmem:[%s345 + $0x10] sm:$0xff]
        %v788 = vld [vmem:[%s345 + $0x18] sm:$0xff]
        %v789 = vperm.slane %v367, 2
        %v791 = vsel %vm368, %v783, 0
        %v794 = vsel %vm368, %v784, 0
        %796 = vmatpush.msra.mxu0 0.0
        %797 = vmatpush.msra.mxu0 0.0
        %798 = vmatpush.msra.mxu0 0.0
        %799 = vmatpush.msra.mxu0 0.0
        %800 = vmatpush.msra.mxu0 0.0
        %801 = vmatpush.msra.mxu0 0.0
        %802 = vmatpush.msra.mxu0 0.0
        %803 = vmatpush.msra.mxu0 0.0
        %804 = vmatpush.msra.mxu0 0.0
        %805 = vmatpush.msra.mxu0 0.0
        %806 = vmatpush.msra.mxu0 0.0
        %807 = vmatpush.msra.mxu0 0.0
        %808 = vmatpush.msra.mxu0 %v788
        %809 = vmatpush.msra.mxu0 %v787
        %810 = vmatpush.msra.mxu0 %v786
        %811 = vmatpush.msra.mxu0 %v785
        %812 = vmatmul.f32.gmra.mxu0 %v791
        %v813 = vpop.f32.mrf.mxu0
        %v814 = vadd.f32 %v789, %v813
        %815 = vmatmul.f32.gmra.mxu0 %v794
        %v816 = vpop.f32.mrf.mxu0
        %v817 = vadd.f32 %v789, %v816
        %818 = vdwg.mxu0
        %v819 = vadd.f32 %v365, %v814
        %v820 = vadd.f32 %v366, %v817
        %v821 = vsel %vm368, %v819, 0.0
        %822 = vadd.xlane.f32.xlu0 %v821
        %v823 = vpop.xlane.xlu0 %822
        %v824 = vsel %vm368, %v820, 0.0
        %825 = vadd.xlane.f32.xlu0 %v824
        %v826 = vpop.xlane.xlu0 %825
        %v827 = vmul.f32 %v823, %v381
        %v828 = vmul.f32 %v826, %v381
        %v829 = vsub.f32 %v819, %v827
        %v830 = vsub.f32 %v820, %v828
        %v831 = vmul.f32 %v829, %v829
        %v832 = vmul.f32 %v830, %v830
        %v833 = vsel %vm368, %v831, 0.0
        %834 = vadd.xlane.f32.xlu0 %v833
        %v835 = vpop.xlane.xlu0 %834
        %v836 = vsel %vm368, %v832, 0.0
        %837 = vadd.xlane.f32.xlu0 %v836
        %v838 = vpop.xlane.xlu0 %837
        %v839 = vmul.f32 %v835, %v381
        %v840 = vmul.f32 %v838, %v381
        %v841 = vadd.f32 %v839, 1e-05
        %v842 = vadd.f32 %v840, 1e-05
        %v843 = vrsqrt.pop %v841
        %v844 = vmul.f32 %v843, %v841
        %v845 = vmul.f32 %v844, %v843
        %v846 = vmul.f32 0.5, %v845
        %v847 = vsub.f32 1.5, %v846
        %v848 = vmul.f32 %v843, %v847
        %vm849 = vweird.f32 %v841
        %vm850 = vweird.f32 %v843
        %vm851 = vmor %vm849, %vm850
        %v852 = vsel %vm851, %v843, %v848
        %v853 = vrsqrt.pop %v842
        %v854 = vmul.f32 %v853, %v842
        %v855 = vmul.f32 %v854, %v853
        %v856 = vmul.f32 0.5, %v855
        %v857 = vsub.f32 1.5, %v856
        %v858 = vmul.f32 %v853, %v857
        %vm859 = vweird.f32 %v842
        %vm860 = vweird.f32 %v853
        %vm861 = vmor %vm859, %vm860
        %v862 = vsel %vm861, %v853, %v858
        %v863 = vmul.f32 %v829, %v852
        %v864 = vmul.f32 %v830, %v862
        %v865 = vperm.slane %v367, 3
        %v866 = vmul.f32 %v863, %v865
        %v867 = vmul.f32 %v864, %v865
        %v868 = vperm.slane %v367, 4
        %v869 = vadd.f32 %v866, %v868
        %v870 = vadd.f32 %v867, %v868
        %v871 = vld [vmem:[%s350] sm:$0xff]
        %v872 = vld [vmem:[%s350 + $0x8] sm:$0xff]
        %v873 = vld [vmem:[%s350 + $0x10] sm:$0xff]
        %v874 = vld [vmem:[%s350 + $0x18] sm:$0xff]
        %v875 = vld [vmem:[%s335] sm:$0x1]
        %v877 = vperm.slane %v875, 0
        %v880 = vsel %vm368, %v869, 0
        %v883 = vsel %vm368, %v870, 0
        %885 = vmatpush.msra.mxu0 0.0
        %886 = vmatpush.msra.mxu0 0.0
        %887 = vmatpush.msra.mxu0 0.0
        %888 = vmatpush.msra.mxu0 0.0
        %889 = vmatpush.msra.mxu0 0.0
        %890 = vmatpush.msra.mxu0 0.0
        %891 = vmatpush.msra.mxu0 0.0
        %892 = vmatpush.msra.mxu0 0.0
        %893 = vmatpush.msra.mxu0 0.0
        %894 = vmatpush.msra.mxu0 0.0
        %895 = vmatpush.msra.mxu0 0.0
        %896 = vmatpush.msra.mxu0 0.0
        %897 = vmatpush.msra.mxu0 %v874
        %898 = vmatpush.msra.mxu0 %v873
        %899 = vmatpush.msra.mxu0 %v872
        %900 = vmatpush.msra.mxu0 %v871
        %901 = vmatmul.f32.gmra.mxu0 %v880
        %v902 = vpop.f32.mrf.mxu0
        %v903 = vadd.f32 %v877, %v902
        %904 = vmatmul.f32.gmra.mxu0 %v883
        %v905 = vpop.f32.mrf.mxu0
        %v906 = vadd.f32 %v877, %v905
        %907 = vdwg.mxu0
        %v908 = vmul.f32 %v903, 0.5
        %v909 = vmul.f32 %v906, 0.5
        %v910 = vmul.f32 %v903, 0.70710677
        %v911 = vmul.f32 %v906, 0.70710677
        %v912 = vmul.f32 %v910, %v910
        %v913 = vmin.f32 16.0, %v912
        %v914 = vmul.f32 %v913, 2.1237322e-06
        %v915 = vadd.f32 %v914, 0.00028619796
        %v916 = vmul.f32 %v913, %v915
        %v917 = vadd.f32 %v916, 0.0036580483
        %v918 = vmul.f32 %v913, %v917
        %v919 = vadd.f32 %v918, 0.05243302
        %v920 = vmul.f32 %v913, %v919
        %v921 = vadd.f32 %v920, 0.18741608
        %v922 = vmul.f32 %v913, %v921
        %v923 = vadd.f32 %v922, 1.1283791
        %v924 = vmul.f32 %v910, %v923
        %v925 = vmul.f32 %v913, 3.8918573e-05
        %v926 = vadd.f32 %v925, 0.001143296
        %v927 = vmul.f32 %v913, %v926
        %v928 = vadd.f32 %v927, 0.014752088
        %v929 = vmul.f32 %v913, %v928
        %v930 = vadd.f32 %v929, 0.112945676
        %v931 = vmul.f32 %v913, %v930
        %v932 = vadd.f32 %v931, 0.4994258
        %v933 = vmul.f32 %v913, %v932
        %v934 = vadd.f32 %v933, 1.0
        %v935 = vrcp.pop %v934
        %v936 = vmul.f32 %v934, %v935
        %v937 = vsub.f32 1.0, %v936
        %v938 = vmul.f32 %v935, %v937
        %v939 = vadd.f32 %v935, %v938
        %vm940 = vweird.f32 %v934
        %vm941 = vweird.f32 %v935
        %vm942 = vmor %vm940, %vm941
        %v943 = vsel %vm942, %v935, %v939
        %v944 = vand.u32 2147483647, %v934
        %vm945 = vcmp.eq.f32.partialorder %v944, 8.507059e+37
        %v946 = vand.u32 %v934, 2147483648
        %v947 = vor.u32 1.1754944e-38, %v946
        %v948 = vsel %vm945, %v947, %v943
        %v949 = vmul.f32 %v924, %v948
        %v950 = vmin.f32 %v949, 1.0
        %v951 = vmax.f32 %v950, -1.0
        %v952 = vmul.f32 %v911, %v911
        %v953 = vmin.f32 16.0, %v952
        %v954 = vmul.f32 %v953, 2.1237322e-06
        %v955 = vadd.f32 %v954, 0.00028619796
        %v956 = vmul.f32 %v953, %v955
        %v957 = vadd.f32 %v956, 0.0036580483
        %v958 = vmul.f32 %v953, %v957
        %v959 = vadd.f32 %v958, 0.05243302
        %v960 = vmul.f32 %v953, %v959
        %v961 = vadd.f32 %v960, 0.18741608
        %v962 = vmul.f32 %v953, %v961
        %v963 = vadd.f32 %v962, 1.1283791
        %v964 = vmul.f32 %v911, %v963
        %v965 = vmul.f32 %v953, 3.8918573e-05
        %v966 = vadd.f32 %v965, 0.001143296
        %v967 = vmul.f32 %v953, %v966
        %v968 = vadd.f32 %v967, 0.014752088
        %v969 = vmul.f32 %v953, %v968
        %v970 = vadd.f32 %v969, 0.112945676
        %v971 = vmul.f32 %v953, %v970
        %v972 = vadd.f32 %v971, 0.4994258
        %v973 = vmul.f32 %v953, %v972
        %v974 = vadd.f32 %v973, 1.0
        %v975 = vrcp.pop %v974
        %v976 = vmul.f32 %v974, %v975
        %v977 = vsub.f32 1.0, %v976
        %v978 = vmul.f32 %v975, %v977
        %v979 = vadd.f32 %v975, %v978
        %vm980 = vweird.f32 %v974
        %vm981 = vweird.f32 %v975
        %vm982 = vmor %vm980, %vm981
        %v983 = vsel %vm982, %v975, %v979
        %v984 = vand.u32 2147483647, %v974
        %vm985 = vcmp.eq.f32.partialorder %v984, 8.507059e+37
        %v986 = vand.u32 %v974, 2147483648
        %v987 = vor.u32 1.1754944e-38, %v986
        %v988 = vsel %vm985, %v987, %v983
        %v989 = vmul.f32 %v964, %v988
        %v990 = vmin.f32 %v989, 1.0
        %v991 = vmax.f32 %v990, -1.0
        %v992 = vadd.f32 %v951, 1.0
        %v993 = vadd.f32 %v991, 1.0
        %v994 = vmul.f32 %v908, %v992
        %v995 = vmul.f32 %v909, %v993
        %v996 = vld [vmem:[%s355] sm:$0xff]
        %v997 = vld [vmem:[%s355 + $0x8] sm:$0xff]
        %v998 = vld [vmem:[%s355 + $0x10] sm:$0xff]
        %v999 = vld [vmem:[%s355 + $0x18] sm:$0xff]
        %v1000 = vld [vmem:[%s355 + $0x20] sm:$0xff]
        %v1001 = vld [vmem:[%s355 + $0x28] sm:$0xff]
        %v1002 = vld [vmem:[%s355 + $0x30] sm:$0xff]
        %v1003 = vld [vmem:[%s355 + $0x38] sm:$0xff]
        %v1004 = vperm.slane %v367, 5
        %vm1005 = vcmask 523264
        %v1007 = vsel %vm1005, %v994, 0
        %v1010 = vsel %vm1005, %v995, 0
        %1012 = vmatpush.msra.mxu0 0.0
        %1013 = vmatpush.msra.mxu0 0.0
        %1014 = vmatpush.msra.mxu0 0.0
        %1015 = vmatpush.msra.mxu0 0.0
        %1016 = vmatpush.msra.mxu0 0.0
        %1017 = vmatpush.msra.mxu0 0.0
        %1018 = vmatpush.msra.mxu0 0.0
        %1019 = vmatpush.msra.mxu0 0.0
        %1020 = vmatpush.msra.mxu0 %v1003
        %1021 = vmatpush.msra.mxu0 %v1002
        %1022 = vmatpush.msra.mxu0 %v1001
        %1023 = vmatpush.msra.mxu0 %v1000
        %1024 = vmatpush.msra.mxu0 %v999
        %1025 = vmatpush.msra.mxu0 %v998
        %1026 = vmatpush.msra.mxu0 %v997
        %1027 = vmatpush.msra.mxu0 %v996
        %1028 = vmatmul.f32.gmra.mxu0 %v1007
        %v1029 = vpop.f32.mrf.mxu0
        %v1030 = vadd.f32 %v1004, %v1029
        %1031 = vmatmul.f32.gmra.mxu0 %v1010
        %v1032 = vpop.f32.mrf.mxu0
        %v1033 = vadd.f32 %v1004, %v1032
        %1034 = vdwg.mxu0
        %v1035 = vadd.f32 %v819, %v1030
        %v1036 = vadd.f32 %v820, %v1033
        %1037 = vst.msk [vmem:[#allocation2] sm:$0xff] %vm368, %v1035
        %1038 = vst.msk [vmem:[#allocation2 + $0x8] sm:$0xff] %vm368, %v1036
        // Predicated region
        $region53: #{tpu_custom_call.1} parent=47 // pred_check
          %p1039 = pneg %p209
        $region54: #{tpu_custom_call.1} parent=47 // pred_check_branch
          %1041 = sbr.rel (%p1039) target = $region56
        $region55: #{tpu_custom_call.1} parent=47 // pred_region
          %1043 = vsyncadd [#allocation3], 0
          %s1044 = sshll.u32 [#allocation2], 4
          %s1045 = int_to_ptr.vmem [resolvable:$true] %s1044
          %s1046 = sshll.u32 %s7, 4
          %s1047 = int_to_ptr.hbm [resolvable:$true] %s1046
          %1052 = dma.vmem_to_hbm [thread:$0]  %s1045, 256, %s1047, [#allocation3], 128, 128, 8
        $region56: #{tpu_custom_call.1} parent=47 // pred_fallthru
          _
        // Predicated region
        $region57: #{tpu_custom_call.1} parent=47 // pred_check
          %p1053 = pneg %p209
        $region58: #{tpu_custom_call.1} parent=47 // pred_check_branch
          %1055 = sbr.rel (%p1053) target = $region60
        $region59: #{tpu_custom_call.1} parent=47 // pred_region
          %1057 = dma.done [#allocation3], 256
        $region60: #{tpu_custom_call.1} parent=47 // pred_fallthru
          _
      $region48: #{tpu_custom_call.1} parent=5 // pred_fallthru
        _
      %p1058 = scmp.le.s32.totalorder 2, %s14
      // Predicated region
      $region61: #{tpu_custom_call.1} parent=5 // pred_check
        %p1059 = pneg %p1058
      $region62: #{tpu_custom_call.1} parent=5 // pred_check_branch
        %1061 = sbr.rel (%p1059) target = $region64
      $region63: #{tpu_custom_call.1} parent=5 // pred_region
        %s1062 = ssub.s32 %s14, 2
      $region64: #{tpu_custom_call.1} parent=5 // pred_fallthru
        _
    $region6: #{tpu_custom_call.1} parent=1 // loop_footer
      %s18 = sadd.s32 1, %s14
    $region7: #{tpu_custom_call.1} parent=1 // loop_footer_branch
      %13 = sbr.rel target = $region3
    $region8: #{tpu_custom_call.1} parent=1 // loop_exit
      _
    %1063 = vsyncpa [#allocation3], 1
    %s1064 = scalar_lea.sflag [#allocation3], 1
    %1065 = vsyncpa %s1064, 1

</llo_original>
